<compile_context>
chip_gen: v6e
topology: v6e:2x2x1
jax: 0.10.0
libtpu: 0.0.40
codegen_flags: <defaults>
</compile_context>

<pallas_src>
import jax
import jax.numpy as jnp
from jax.experimental import pallas as pl
from jax.experimental.pallas import tpu as pltpu


def _round_up(n, m):
    return ((n + m - 1) // m) * m


def _vmem_capacity_bytes():
    try:
        info = pltpu.get_tpu_info()
        cap = int(getattr(info, "vmem_capacity_bytes", 0))
        if cap > 0:
            return cap
    except Exception:
        pass
    return 64 << 20  # conservative (v7x per-TensorCore) fallback


def _choose_batch_tile(B, WC, WO, vmem_cap):
    """Pick the batch tile TB from *padded* VMEM bytes, not nominal bytes."""
    wc_pad = _round_up(WC, 128)
    wo_pad = _round_up(WO, 128)
    # 2x double-buffered bf16 x tile + f32 conv intermediate + f32 (1,TB) out.
    bytes_per_row = 2 * wc_pad * 2 + wo_pad * 4 + 2 * 4
    budget = max(vmem_cap // 4, 4 << 20)
    tb_cap = max(128, (budget // bytes_per_row) // 128 * 128)
    tb_cap = min(tb_cap, 2048)

    if B <= 128:
        TB = _round_up(B, 8)                 # single full-extent block
    else:
        b128 = _round_up(B, 128)
        TB = min(b128, tb_cap)               # lane-dense (multiple of 128)
        if b128 >= 256:
            # Keep >= 2 grid steps so v7x's two TensorCores both get work.
            TB = min(TB, _round_up(b128 // 2, 128))
    B_pad = _round_up(B, TB)
    return TB, B_pad


def _decoder_kernel(x_ref, wbig_ref, cb_ref, fcw_ref, fcb_ref, out_ref):
    # x_ref:    (TB, W*C)     bf16  batch tile, x_flat[b, w*C + c] = x[b, c, w]
    # wbig_ref: (W*C, W*64)   bf16  block-banded conv-as-matmul weight (resident)
    # cb_ref:   (1, W*64)     f32   conv bias tiled over positions (resident)
    # fcw_ref:  (1, W*64)     f32   fc weight in (t*64 + o) order (resident)
    # fcb_ref:  (1,)          f32   fc bias (SMEM scalar)
    # out_ref:  (1, TB)       f32   sigmoid output, batch on the lane axis

    # Conv1d(k=3, pad=1) for all W output positions in a single MXU matmul.
    conv = jax.lax.dot_general(
        x_ref[...], wbig_ref[...],
        dimension_numbers=(((1,), (0,)), ((), ())),
        preferred_element_type=jnp.float32)                 # (TB, W*64)
    conv = jnp.maximum(conv + cb_ref[...], 0.0)             # bias + ReLU

    # Linear(64*W, 1): contract the flattened axis on the MXU, producing the
    # lane-dense (1, TB) result directly (no sublane->lane relayout).
    s = jax.lax.dot_general(
        fcw_ref[...], conv,
        dimension_numbers=(((1,), (1,)), ((), ())),
        preferred_element_type=jnp.float32)                 # (1, TB)

    out_ref[...] = jax.nn.sigmoid(s + fcb_ref[0])


def cnn_silence_decoder_simple(x, conv_w, conv_b, fc_w, fc_b):
    """x: (B, C, W) NCW. conv_w: (64, C, 3). conv_b: (64,). fc_w: (1, 64*W). fc_b: (1,)."""
    B, C, W = x.shape
    O = conv_w.shape[0]                     # 64
    WC, WO = W * C, W * O

    vmem_cap = _vmem_capacity_bytes()
    TB, B_pad = _choose_batch_tile(B, WC, WO, vmem_cap)
    G = B_pad // TB
    vmem_limit = max(32 << 20, min(64 << 20, vmem_cap // 2))

    # ---- input relayout: (B, C, W) -> lane-dense (B, W*C) bf16 ---------------
    # TODO(synk): this transpose/cast is one extra XLA pass over x in HBM; if the
    # producer can emit (B, W, C)/bf16 directly (or allow_input_fusion is viable)
    # this should be dropped from the hot path.
    x_flat = jnp.transpose(x, (0, 2, 1)).reshape(B, WC).astype(jnp.bfloat16)
    if B_pad != B:
        x_flat = jnp.pad(x_flat, ((0, B_pad - B), (0, 0)))   # zero rows, sliced off

    # ---- conv as one block-banded matmul weight ------------------------------
    # w_big[win*C + c, t*O + o] = conv_w[o, c, win - t + 1] if that tap exists, else 0.
    w_taps = jnp.transpose(conv_w, (2, 1, 0)).astype(jnp.float32)   # (3, C, O)
    zero_blk = jnp.zeros((C, O), jnp.float32)
    cols = []
    for t in range(W):
        rows = []
        for win in range(W):
            k = win - t + 1
            rows.append(w_taps[k] if 0 <= k <= 2 else zero_blk)
        cols.append(jnp.concatenate(rows, axis=0))                  # (W*C, O)
    w_big = jnp.concatenate(cols, axis=1).astype(jnp.bfloat16)      # (W*C, W*O)

    # Biases / FC weight in the kernel's (t*O + o) flatten order.
    cb_flat = jnp.tile(conv_b.astype(jnp.float32), W).reshape(1, WO)          # [t*O+o] = conv_b[o]
    fcw_flat = fc_w.reshape(O, W).T.reshape(1, WO).astype(jnp.float32)        # [t*O+o] = fc_w[0, o*W+t]
    fcb = fc_b.reshape(1).astype(jnp.float32)

    grid_spec = pltpu.PrefetchScalarGridSpec(
        num_scalar_prefetch=0,
        grid=(G,),
        in_specs=[
            pl.BlockSpec((TB, WC), lambda b: (b, 0)),               # pipelined batch tiles
            pl.BlockSpec((WC, WO), lambda b: (0, 0)),               # resident conv weight slab
            pl.BlockSpec((1, WO), lambda b: (0, 0)),                # resident conv bias
            pl.BlockSpec((1, WO), lambda b: (0, 0)),                # resident fc weight
            pl.BlockSpec(memory_space=pltpu.MemorySpace.SMEM),      # fc bias scalar
        ],
        out_specs=pl.BlockSpec((1, TB), lambda b: (0, b)),          # lane-dense output
        scratch_shapes=[],
    )

    out_row = pl.pallas_call(
        _decoder_kernel,
        out_shape=jax.ShapeDtypeStruct((1, B_pad), jnp.float32),
        grid_spec=grid_spec,
        compiler_params=pltpu.CompilerParams(
            dimension_semantics=("parallel",),
            vmem_limit_bytes=vmem_limit,
        ),
    )(x_flat, w_big, cb_flat, fcw_flat, fcb)

    return out_row[0, :B].reshape(B, 1)


def _reference(x, conv_w, conv_b, fc_w, fc_b):
    """Independent pure-JAX reference (lax conv, PyTorch flatten order)."""
    conv = jax.lax.conv_general_dilated(
        x, conv_w, window_strides=(1,), padding=((1, 1),),
        dimension_numbers=("NCH", "OIH", "NCH"),
    ) + conv_b[None, :, None]                                        # (B, 64, W)
    conv = jnp.maximum(conv, 0.0)
    flat = conv.reshape(conv.shape[0], -1)                           # (B, 64*W)
    return jax.nn.sigmoid(flat @ fc_w.T + fc_b[None, :])             # (B, 1)


if __name__ == "__main__":
    # Small shapes consistent with the module: Conv1d(C -> 64, k=3, pad=1),
    # Linear(64 * window_size, 1), window_size = 5.
    B, C, W, O = 2, 32, 5, 64

    key = jax.random.PRNGKey(0)
    k1, k2, k3, k4, k5 = jax.random.split(key, 5)

    x = jax.random.normal(k1, (B, C, W), dtype=jnp.float32)
    conv_w = jax.random.normal(k2, (O, C, 3), dtype=jnp.float32) * 0.05
    conv_b = jax.random.normal(k3, (O,), dtype=jnp.float32) * 0.05
    fc_w = jax.random.normal(k4, (1, O * W), dtype=jnp.float32) * 0.05
    fc_b = jax.random.normal(k5, (1,), dtype=jnp.float32) * 0.05

    out = cnn_silence_decoder_simple(x, conv_w, conv_b, fc_w, fc_b)
    out = jax.block_until_ready(out)

    ref = _reference(x, conv_w, conv_b, fc_w, fc_b)
    assert out.shape == (B, 1)
    # bf16 matmul operands (f32 accumulate) -> loosened tolerance.
    assert jnp.allclose(out, ref, rtol=2e-2, atol=2e-2), (out, ref)

    print("KERNEL_OK")
</pallas_src>

<mosaic_0001>
module attributes {stable_mosaic.version = 11 : i64} {
  func.func @_decoder_kernel(%arg0: i32, %arg1: memref<8x160xbf16, #tpu.memory_space<vmem>>, %arg2: memref<160x320xbf16, #tpu.memory_space<vmem>>, %arg3: memref<1x320xf32, #tpu.memory_space<vmem>>, %arg4: memref<1x320xf32, #tpu.memory_space<vmem>>, %arg5: memref<1xf32, #tpu.memory_space<smem>>, %arg6: memref<1x8xf32, #tpu.memory_space<vmem>>) attributes {dimension_semantics = [#tpu.dimension_semantics<parallel>], iteration_bounds = array<i64: 1>, scalar_prefetch = 0 : i64, scratch_operands = 0 : i64, tpu.core_type = #tpu.core_type<tc>, window_params = [{transform_indices = @transform_0, window_bounds = array<i64: 8, 160>}, {pipeline_mode = #tpu.pipeline_mode<synchronous>, transform_indices = @transform_1, window_bounds = array<i64: 160, 320>}, {pipeline_mode = #tpu.pipeline_mode<synchronous>, transform_indices = @transform_2, window_bounds = array<i64: 1, 320>}, {pipeline_mode = #tpu.pipeline_mode<synchronous>, transform_indices = @transform_3, window_bounds = array<i64: 1, 320>}, {transform_indices = @transform_4, window_bounds = array<i64: 1>}, {transform_indices = @transform_5, window_bounds = array<i64: 1, 8>}]} {
    %c0 = arith.constant 0 : index
    %c0_0 = arith.constant 0 : index
    %0 = vector.load %arg1[%c0, %c0_0] : memref<8x160xbf16, #tpu.memory_space<vmem>>, vector<8x160xbf16>
    %c0_1 = arith.constant 0 : index
    %c0_2 = arith.constant 0 : index
    %1 = vector.load %arg2[%c0_1, %c0_2] : memref<160x320xbf16, #tpu.memory_space<vmem>>, vector<160x320xbf16>
    %cst = arith.constant dense<0.000000e+00> : vector<8x320xf32>
    %2 = tpu.matmul %0, %1, %cst {dimension_numbers = #tpu.dot_dimension_numbers<[1], [0], [0], [1], [0, 0, 1, 1], [], []>} : vector<8x160xbf16>, vector<160x320xbf16>, vector<8x320xf32> -> vector<8x320xf32>
    %c0_3 = arith.constant 0 : index
    %c0_4 = arith.constant 0 : index
    %3 = vector.load %arg3[%c0_3, %c0_4] : memref<1x320xf32, #tpu.memory_space<vmem>>, vector<1x320xf32>
    %4 = vector.broadcast %3 : vector<1x320xf32> to vector<8x320xf32>
    %5 = arith.addf %2, %4 : vector<8x320xf32>
    %cst_5 = arith.constant 0.000000e+00 : f32
    %6 = vector.broadcast %cst_5 : f32 to vector<8x320xf32>
    %7 = arith.maximumf %5, %6 : vector<8x320xf32>
    %c0_6 = arith.constant 0 : index
    %c0_7 = arith.constant 0 : index
    %8 = vector.load %arg4[%c0_6, %c0_7] : memref<1x320xf32, #tpu.memory_space<vmem>>, vector<1x320xf32>
    %cst_8 = arith.constant dense<0.000000e+00> : vector<1x8xf32>
    %9 = tpu.matmul %8, %7, %cst_8 {dimension_numbers = #tpu.dot_dimension_numbers<[1], [1], [0], [0], [0, 0, 1, 0], [], []>} : vector<1x320xf32>, vector<8x320xf32>, vector<1x8xf32> -> vector<1x8xf32>
    %c0_9 = arith.constant 0 : index
    %10 = memref.load %arg5[%c0_9] : memref<1xf32, #tpu.memory_space<smem>>
    %11 = vector.broadcast %10 : f32 to vector<1x8xf32>
    %12 = arith.addf %9, %11 : vector<1x8xf32>
    %13 = arith.negf %12 : vector<1x8xf32>
    %14 = math.exp %13 : vector<1x8xf32>
    %cst_10 = arith.constant 1.000000e+00 : f32
    %15 = vector.broadcast %cst_10 : f32 to vector<1x8xf32>
    %16 = arith.addf %15, %14 : vector<1x8xf32>
    %17 = arith.divf %15, %16 : vector<1x8xf32>
    %c0_11 = arith.constant 0 : index
    %c0_12 = arith.constant 0 : index
    %18 = vector.load %arg6[%c0_11, %c0_12] : memref<1x8xf32, #tpu.memory_space<vmem>>, vector<1x8xf32>
    tpu.vector_store %arg6[%c0_11, %c0_12], %17 {strides = array<i32>} : memref<1x8xf32, #tpu.memory_space<vmem>>, vector<1x8xf32>,
    return
  }
  func.func @transform_0(%arg0: i32) -> (i32, i32) {
    %c0_i32 = arith.constant 0 : i32
    %c0_i32_0 = arith.constant 0 : i32
    return %arg0, %c0_i32 : i32, i32
  }
  func.func @transform_1(%arg0: i32) -> (i32, i32) {
    %c0_i32 = arith.constant 0 : i32
    %c0_i32_0 = arith.constant 0 : i32
    %c0_i32_1 = arith.constant 0 : i32
    return %c0_i32, %c0_i32_0 : i32, i32
  }
  func.func @transform_2(%arg0: i32) -> (i32, i32) {
    %c0_i32 = arith.constant 0 : i32
    %c0_i32_0 = arith.constant 0 : i32
    %c0_i32_1 = arith.constant 0 : i32
    return %c0_i32, %c0_i32_0 : i32, i32
  }
  func.func @transform_3(%arg0: i32) -> (i32, i32) {
    %c0_i32 = arith.constant 0 : i32
    %c0_i32_0 = arith.constant 0 : i32
    %c0_i32_1 = arith.constant 0 : i32
    return %c0_i32, %c0_i32_0 : i32, i32
  }
  func.func @transform_4(%arg0: i32) -> i32 {
    %c0_i32 = arith.constant 0 : i32
    %c0_i32_0 = arith.constant 0 : i32
    return %c0_i32 : i32
  }
  func.func @transform_5(%arg0: i32) -> (i32, i32) {
    %c0_i32 = arith.constant 0 : i32
    %c0_i32_0 = arith.constant 0 : i32
    return %c0_i32, %arg0 : i32, i32
  }
}

</mosaic_0001>

<llo_original>
// kernel: tpu_custom_call.1
$region0: #{tpu_custom_call.1}
  #allocation0 [shape = 'u32[]', space=smem, size = 0x4, offset = 0x4, fixed_abs, tag = 'smem constant byte address 0x4 - core index']
  #allocation1 [shape = 'u32[144,128]{1,0:T(1,128)}', space=vmem, size = 0x12000, scoped, tag = 'internal scratch']
  #allocation2 [shape = 'f32[1]{0:T(128)S(6)}', space=smem, size = 0x200, scoped, tag = 'scoped memory for tpu_custom_call.1']
  %s0 = inlined_call_operand.hbm [shape: bf16[8,160], index: 0, kind: input, shape index: {}]
  %s1 = inlined_call_operand.hbm [shape: bf16[160,320], index: 1, kind: input, shape index: {}]
  %s2 = inlined_call_operand.vmem [shape: f32[1,320], index: 2, kind: input, shape index: {}]
  %s3 = inlined_call_operand.vmem [shape: f32[1,320], index: 3, kind: input, shape index: {}]
  %s4 = inlined_call_operand.<no memory space> [shape: f32[1], index: 4, kind: input, shape index: {}]
  %s5 = inlined_call_operand.hbm [shape: f32[1,8], index: 5, kind: output, shape index: {}]
  %s6 = sld [smem:[#allocation0]]
  $region38: #{tpu_custom_call.1} parent=0
    _
  %s8 = ssub.s32 1, %s6
  %s9 = scalar_select 0, %s8, %s6
  %10 = sst [smem:[#allocation2]] %s4
  $region1: #{tpu_custom_call.1} parent=0
    #allocation3 [shape = 'u8[4096]{0}', space=vmem, size = 0x1000, scoped, tag = 'input window, operand 0, single buffered']
    #allocation4 [shape = 's32[1]{0}', space=sflag, size = 0x4, scoped, tag = 'scoped memory for tpu_custom_call.1']
    #allocation5 [shape = 's32[1]{0}', space=sflag, size = 0x4, scoped, tag = 'scoped memory for tpu_custom_call.1']
    #allocation6 [shape = 'u8[122880]{0}', space=vmem, size = 0x1e000, scoped, tag = 'input window, operand 1, single buffered']
    #allocation7 [shape = 's32[1]{0}', space=sflag, size = 0x4, scoped, tag = 'scoped memory for tpu_custom_call.1']
    #allocation8 [shape = 'u8[512]{0}', space=vmem, size = 0x400, scoped, tag = 'output window, operand 0, single buffered']
    %11 = vsyncpa [#allocation4], 0
    %12 = vsyncpa [#allocation7], 0
    %13 = vsyncpa [#allocation5], 0
    // Predicated region
    $region2: #{tpu_custom_call.1} parent=1 // pred_check
      _
    $region3: #{tpu_custom_call.1} parent=1 // pred_check_branch
      %15 = sbr.rel (0) target = $region5
    $region4: #{tpu_custom_call.1} parent=1 // pred_region
      %s17 = ssub.s32 128, 128
      %18 = vsyncadd [#allocation4], %s17
      %s20 = sshll.u32 [#allocation3], 4
      %s21 = int_to_ptr.vmem [resolvable:$true] %s20
      %23 = dma.hbm_to_vmem [thread:$0]  %s0, 128, %s21, [#allocation4]
    $region5: #{tpu_custom_call.1} parent=1 // pred_fallthru
      _
    // Predicated region
    $region6: #{tpu_custom_call.1} parent=1 // pred_check
      _
    $region7: #{tpu_custom_call.1} parent=1 // pred_check_branch
      %25 = sbr.rel (0) target = $region9
    $region8: #{tpu_custom_call.1} parent=1 // pred_region
      %s27 = ssub.s32 3840, 3840
      %28 = vsyncadd [#allocation7], %s27
      %s29 = sshll.u32 [#allocation6], 4
      %s30 = int_to_ptr.vmem [resolvable:$true] %s29
      %35 = dma.hbm_to_vmem [thread:$0]  %s1, 3840, %s30, [#allocation7], 192, 192, 12
    $region9: #{tpu_custom_call.1} parent=1 // pred_fallthru
      _
    // Predicated region
    $region10: #{tpu_custom_call.1} parent=1 // pred_check
      _
    $region11: #{tpu_custom_call.1} parent=1 // pred_check_branch
      %37 = sbr.rel (0) target = $region13
    $region12: #{tpu_custom_call.1} parent=1 // pred_region
      _
    $region13: #{tpu_custom_call.1} parent=1 // pred_fallthru
      _
    // Predicated region
    $region14: #{tpu_custom_call.1} parent=1 // pred_check
      _
    $region15: #{tpu_custom_call.1} parent=1 // pred_check_branch
      %39 = sbr.rel (0) target = $region17
    $region16: #{tpu_custom_call.1} parent=1 // pred_region
      _
    $region17: #{tpu_custom_call.1} parent=1 // pred_fallthru
      _
    // Predicated region
    $region18: #{tpu_custom_call.1} parent=1 // pred_check
      _
    $region19: #{tpu_custom_call.1} parent=1 // pred_check_branch
      %41 = sbr.rel (0) target = $region21
    $region20: #{tpu_custom_call.1} parent=1 // pred_region
      _
    $region21: #{tpu_custom_call.1} parent=1 // pred_fallthru
      _
    // Predicated region
    $region22: #{tpu_custom_call.1} parent=1 // pred_check
      _
    $region23: #{tpu_custom_call.1} parent=1 // pred_check_branch
      %43 = sbr.rel (0) target = $region25
    $region24: #{tpu_custom_call.1} parent=1 // pred_region
      %44 = dma.done [#allocation4], 128
    $region25: #{tpu_custom_call.1} parent=1 // pred_fallthru
      _
    // Predicated region
    $region26: #{tpu_custom_call.1} parent=1 // pred_check
      _
    $region27: #{tpu_custom_call.1} parent=1 // pred_check_branch
      %46 = sbr.rel (0) target = $region29
    $region28: #{tpu_custom_call.1} parent=1 // pred_region
      %47 = dma.done [#allocation7], 3840
    $region29: #{tpu_custom_call.1} parent=1 // pred_fallthru
      _
    %v49 = vld [vmem:[#allocation3] sm:$0xff]
    %v50 = vld [vmem:[#allocation6] sm:$0xff]
    %v51 = vld [vmem:[#allocation6 + $0x8] sm:$0xf]
    %v52 = vld [vmem:[#allocation6 + $0xc] sm:$0xff]
    %v53 = vld [vmem:[#allocation6 + $0x14] sm:$0xf]
    %v54 = vld [vmem:[#allocation6 + $0x18] sm:$0xff]
    %v55 = vld [vmem:[#allocation6 + $0x20] sm:$0xf]
    %v56 = vld [vmem:[#allocation6 + $0x24] sm:$0xff]
    %v57 = vld [vmem:[#allocation6 + $0x2c] sm:$0xf]
    %v58 = vld [vmem:[#allocation6 + $0x30] sm:$0xff]
    %v59 = vld [vmem:[#allocation6 + $0x38] sm:$0xf]
    %v60 = vld [vmem:[#allocation6 + $0x3c] sm:$0xff]
    %v61 = vld [vmem:[#allocation6 + $0x44] sm:$0xf]
    %v62 = vld [vmem:[#allocation6 + $0x48] sm:$0xff]
    %v63 = vld [vmem:[#allocation6 + $0x50] sm:$0xf]
    %v64 = vld [vmem:[#allocation6 + $0x54] sm:$0xff]
    %v65 = vld [vmem:[#allocation6 + $0x5c] sm:$0xf]
    %v66 = vld [vmem:[#allocation6 + $0x60] sm:$0xff]
    %v67 = vld [vmem:[#allocation6 + $0x68] sm:$0xf]
    %v68 = vld [vmem:[#allocation6 + $0x6c] sm:$0xff]
    %v69 = vld [vmem:[#allocation6 + $0x74] sm:$0xf]
    %v70 = vld [vmem:[#allocation6 + $0x78] sm:$0xff]
    %v71 = vld [vmem:[#allocation6 + $0x80] sm:$0xf]
    %v72 = vld [vmem:[#allocation6 + $0x84] sm:$0xff]
    %v73 = vld [vmem:[#allocation6 + $0x8c] sm:$0xf]
    %v74 = vld [vmem:[#allocation6 + $0x90] sm:$0xff]
    %v75 = vld [vmem:[#allocation6 + $0x98] sm:$0xf]
    %v76 = vld [vmem:[#allocation6 + $0x9c] sm:$0xff]
    %v77 = vld [vmem:[#allocation6 + $0xa4] sm:$0xf]
    %v78 = vld [vmem:[#allocation6 + $0xa8] sm:$0xff]
    %v79 = vld [vmem:[#allocation6 + $0xb0] sm:$0xf]
    %v80 = vld [vmem:[#allocation6 + $0xb4] sm:$0xff]
    %v81 = vld [vmem:[#allocation6 + $0xbc] sm:$0xf]
    %v82 = vld [vmem:[#allocation6 + $0xc0] sm:$0xff]
    %v83 = vld [vmem:[#allocation6 + $0xc8] sm:$0xf]
    %v84 = vld [vmem:[#allocation6 + $0xcc] sm:$0xff]
    %v85 = vld [vmem:[#allocation6 + $0xd4] sm:$0xf]
    %v86 = vld [vmem:[#allocation6 + $0xd8] sm:$0xff]
    %v87 = vld [vmem:[#allocation6 + $0xe0] sm:$0xf]
    %v88 = vld [vmem:[#allocation6 + $0xe4] sm:$0xff]
    %v89 = vld [vmem:[#allocation6 + $0xec] sm:$0xf]
    %v90 = vld [vmem:[%s2] sm:$0x7]
    %v92 = vlaneseq
    %v93 = vshrl.u32 %v92, 7
    %v94 = vsub.s32 0, %v93
    %v95 = vrot.slane %v90, %v94
    %v96 = vlaneseq
    %v97 = vshrl.u32 %v96, 7
    %v98 = vsub.s32 1, %v97
    %v99 = vrot.slane %v90, %v98
    %v100 = vlaneseq
    %v101 = vshrl.u32 %v100, 7
    %v102 = vsub.s32 2, %v101
    %v103 = vrot.slane %v90, %v102
    %v108 = vunpack.c.l.b16 %v49
    %v109 = vunpack.c.h.b16 %v49
    %v110 = vpack.c.b16 %v108, %v108
    %v111 = vpack.c.b16 %v109, %v109
    %v153 = vunpack.c.l.b16 %v50
    %v154 = vunpack.c.h.b16 %v50
    %v155 = vunpack.c.l.b16 %v51
    %v156 = vunpack.c.l.b16 %v52
    %v157 = vunpack.c.h.b16 %v52
    %v158 = vunpack.c.l.b16 %v53
    %v159 = vunpack.c.l.b16 %v54
    %v160 = vunpack.c.h.b16 %v54
    %v161 = vunpack.c.l.b16 %v55
    %v162 = vunpack.c.l.b16 %v56
    %v163 = vunpack.c.h.b16 %v56
    %v164 = vunpack.c.l.b16 %v57
    %v165 = vunpack.c.l.b16 %v58
    %v166 = vunpack.c.h.b16 %v58
    %v167 = vunpack.c.l.b16 %v59
    %v168 = vunpack.c.l.b16 %v60
    %v169 = vunpack.c.h.b16 %v60
    %v170 = vunpack.c.l.b16 %v61
    %v171 = vunpack.c.l.b16 %v62
    %v172 = vunpack.c.h.b16 %v62
    %v173 = vunpack.c.l.b16 %v63
    %v174 = vunpack.c.l.b16 %v64
    %v175 = vunpack.c.h.b16 %v64
    %v176 = vunpack.c.l.b16 %v65
    %v177 = vunpack.c.l.b16 %v66
    %v178 = vunpack.c.h.b16 %v66
    %v179 = vunpack.c.l.b16 %v67
    %v180 = vunpack.c.l.b16 %v68
    %v181 = vunpack.c.h.b16 %v68
    %v182 = vunpack.c.l.b16 %v69
    %v183 = vunpack.c.l.b16 %v70
    %v184 = vunpack.c.h.b16 %v70
    %v185 = vunpack.c.l.b16 %v71
    %v186 = vunpack.c.l.b16 %v72
    %v187 = vunpack.c.h.b16 %v72
    %v188 = vunpack.c.l.b16 %v73
    %v189 = vunpack.c.l.b16 %v74
    %v190 = vunpack.c.h.b16 %v74
    %v191 = vunpack.c.l.b16 %v75
    %v192 = vunpack.c.l.b16 %v76
    %v193 = vunpack.c.h.b16 %v76
    %v194 = vunpack.c.l.b16 %v77
    %v195 = vunpack.c.l.b16 %v78
    %v196 = vunpack.c.h.b16 %v78
    %v197 = vunpack.c.l.b16 %v79
    %v198 = vunpack.c.l.b16 %v80
    %v199 = vunpack.c.h.b16 %v80
    %v200 = vunpack.c.l.b16 %v81
    %v201 = vunpack.c.l.b16 %v82
    %v202 = vunpack.c.h.b16 %v82
    %v203 = vunpack.c.l.b16 %v83
    %v204 = vunpack.c.l.b16 %v84
    %v205 = vunpack.c.h.b16 %v84
    %v206 = vunpack.c.l.b16 %v85
    %v207 = vunpack.c.l.b16 %v86
    %v208 = vunpack.c.h.b16 %v86
    %v209 = vunpack.c.l.b16 %v87
    %v210 = vunpack.c.l.b16 %v88
    %v211 = vunpack.c.h.b16 %v88
    %v212 = vunpack.c.l.b16 %v89
    %v213 = vpack.c.b16 %v156, %v153
    %v214 = vpack.c.b16 %v157, %v154
    %v215 = vpack.c.b16 %v158, %v155
    %v216 = vpack.c.b16 %v162, %v159
    %v217 = vpack.c.b16 %v163, %v160
    %v218 = vpack.c.b16 %v164, %v161
    %v219 = vpack.c.b16 %v168, %v165
    %v220 = vpack.c.b16 %v169, %v166
    %v221 = vpack.c.b16 %v170, %v167
    %v222 = vpack.c.b16 %v174, %v171
    %v223 = vpack.c.b16 %v175, %v172
    %v224 = vpack.c.b16 %v176, %v173
    %v225 = vpack.c.b16 %v180, %v177
    %v226 = vpack.c.b16 %v181, %v178
    %v227 = vpack.c.b16 %v182, %v179
    %v228 = vpack.c.b16 %v186, %v183
    %v229 = vpack.c.b16 %v187, %v184
    %v230 = vpack.c.b16 %v188, %v185
    %v231 = vpack.c.b16 %v192, %v189
    %v232 = vpack.c.b16 %v193, %v190
    %v233 = vpack.c.b16 %v194, %v191
    %v234 = vpack.c.b16 %v198, %v195
    %v235 = vpack.c.b16 %v199, %v196
    %v236 = vpack.c.b16 %v200, %v197
    %v237 = vpack.c.b16 %v204, %v201
    %v238 = vpack.c.b16 %v205, %v202
    %v239 = vpack.c.b16 %v206, %v203
    %v240 = vpack.c.b16 %v210, %v207
    %v241 = vpack.c.b16 %v211, %v208
    %v242 = vpack.c.b16 %v212, %v209
    %vm273 = vcmask 261120
    %v275 = vsel %vm273, %v111, 0
    %277 = vmatprep.subr.bf16.mxu0 %v235
    %278 = vmatpush1.bf16.msra.mxu0 %v234
    %279 = vmatprep.subr.bf16.mxu0 %v232
    %280 = vmatpush1.bf16.msra.mxu0 %v231
    %281 = vmatprep.subr.bf16.mxu0 %v229
    %282 = vmatpush1.bf16.msra.mxu0 %v228
    %283 = vmatprep.subr.bf16.mxu0 %v226
    %284 = vmatpush1.bf16.msra.mxu0 %v225
    %285 = vmatprep.subr.bf16.mxu0 %v223
    %286 = vmatpush1.bf16.msra.mxu0 %v222
    %287 = vmatprep.subr.bf16.mxu0 %v220
    %288 = vmatpush1.bf16.msra.mxu0 %v219
    %289 = vmatprep.subr.bf16.mxu0 %v217
    %290 = vmatpush1.bf16.msra.mxu0 %v216
    %291 = vmatprep.subr.bf16.mxu0 %v214
    %292 = vmatpush1.bf16.msra.mxu0 %v213
    %293 = vmatprep.subr.bf16.mxu0 0
    %294 = vmatpush2.bf16.msra.mxu0 0
    %295 = vmatprep.subr.bf16.mxu0 0
    %296 = vmatpush2.bf16.msra.mxu0 0
    %297 = vmatprep.subr.bf16.mxu0 0
    %298 = vmatpush2.bf16.msra.mxu0 0
    %299 = vmatprep.subr.bf16.mxu0 0
    %300 = vmatpush2.bf16.msra.mxu0 0
    %301 = vmatprep.subr.bf16.mxu0 0
    %302 = vmatpush2.bf16.msra.mxu0 0
    %303 = vmatprep.subr.bf16.mxu0 0
    %304 = vmatpush2.bf16.msra.mxu0 0
    %305 = vmatprep.subr.bf16.mxu0 %v241
    %306 = vmatpush2.bf16.msra.mxu0 %v240
    %307 = vmatprep.subr.bf16.mxu0 %v238
    %308 = vmatpush2.bf16.msra.mxu0 %v237
    %309 = vmatprep.mubr.bf16.mxu0 %v275
    %310 = vmatmul.mubr.bf16.gmra.mxu0 %v110
    %v311 = vpop.f32.mrf.mxu0
    %v312 = vadd.f32 %v95, %v311
    %v313 = vpop.f32.mrf.mxu0
    %v314 = vadd.f32 %v99, %v313
    %v315 = vpop.f32.mrf.mxu0
    %v316 = vpop.f32.mrf.mxu0
    %317 = vdwg.mxu0
    %318 = vmatprep.subr.bf16.mxu0 0
    %319 = vmatpush1.bf16.msra.mxu0 %v236
    %320 = vmatprep.subr.bf16.mxu0 0
    %321 = vmatpush1.bf16.msra.mxu0 %v233
    %322 = vmatprep.subr.bf16.mxu0 0
    %323 = vmatpush1.bf16.msra.mxu0 %v230
    %324 = vmatprep.subr.bf16.mxu0 0
    %325 = vmatpush1.bf16.msra.mxu0 %v227
    %326 = vmatprep.subr.bf16.mxu0 0
    %327 = vmatpush1.bf16.msra.mxu0 %v224
    %328 = vmatprep.subr.bf16.mxu0 0
    %329 = vmatpush1.bf16.msra.mxu0 %v221
    %330 = vmatprep.subr.bf16.mxu0 0
    %331 = vmatpush1.bf16.msra.mxu0 %v218
    %332 = vmatprep.subr.bf16.mxu0 0
    %333 = vmatpush1.bf16.msra.mxu0 %v215
    %334 = vmatprep.subr.bf16.mxu0 0
    %335 = vmatpush2.bf16.msra.mxu0 0
    %336 = vmatprep.subr.bf16.mxu0 0
    %337 = vmatpush2.bf16.msra.mxu0 0
    %338 = vmatprep.subr.bf16.mxu0 0
    %339 = vmatpush2.bf16.msra.mxu0 0
    %340 = vmatprep.subr.bf16.mxu0 0
    %341 = vmatpush2.bf16.msra.mxu0 0
    %342 = vmatprep.subr.bf16.mxu0 0
    %343 = vmatpush2.bf16.msra.mxu0 0
    %344 = vmatprep.subr.bf16.mxu0 0
    %345 = vmatpush2.bf16.msra.mxu0 0
    %346 = vmatprep.subr.bf16.mxu0 0
    %347 = vmatpush2.bf16.msra.mxu0 %v242
    %348 = vmatprep.subr.bf16.mxu0 0
    %349 = vmatpush2.bf16.msra.mxu0 %v239
    %350 = vmatprep.mubr.bf16.mxu0 %v275
    %351 = vmatmul.mubr.bf16.gmra.mxu0 %v110
    %v352 = vpop.f32.mrf.mxu0
    %v353 = vadd.f32 %v103, %v352
    %v354 = vpop.f32.mrf.mxu0
    %v355 = vpop.f32.mrf.mxu0
    %v356 = vpop.f32.mrf.mxu0
    %357 = vdwg.mxu0
    %v358 = vmax.f32 %v312, 0.0
    %v359 = vmax.f32 %v314, 0.0
    %v360 = vmax.f32 %v353, 0.0
    %v361 = vld [vmem:[%s3] sm:$0x7]
    %s362 = sld [smem:[#allocation2]]
    %v363 = vstv %s362
    %v365 = vlaneseq
    %v366 = vshrl.u32 %v365, 7
    %v367 = vsub.s32 0, %v366
    %v368 = vrot.slane %v361, %v367
    %v369 = vlaneseq
    %v370 = vshrl.u32 %v369, 7
    %v371 = vsub.s32 1, %v370
    %v372 = vrot.slane %v361, %v371
    %v373 = vlaneseq
    %v374 = vshrl.u32 %v373, 7
    %v375 = vsub.s32 2, %v374
    %v376 = vrot.slane %v361, %v375
    %vm379 = vcmask 523264
    %v380 = vsel %vm379, %v376, 0
    %v383 = vsel %vm379, %v360, 0
    %385 = vmatprep.subr.mxu0 0.0
    %386 = vmatpush1.xpose.msra.mxu0 0.0
    %387 = vmatprep.subr.mxu0 0.0
    %388 = vmatpush1.xpose.msra.mxu0 0.0
    %389 = vmatprep.subr.mxu0 0.0
    %390 = vmatpush1.xpose.msra.mxu0 0.0
    %391 = vmatprep.subr.mxu0 0.0
    %392 = vmatpush1.xpose.msra.mxu0 0.0
    %393 = vmatprep.subr.mxu0 0.0
    %394 = vmatpush1.xpose.msra.mxu0 0.0
    %395 = vmatprep.subr.mxu0 0.0
    %396 = vmatpush1.xpose.msra.mxu0 0.0
    %397 = vmatprep.subr.mxu0 0.0
    %398 = vmatpush1.xpose.msra.mxu0 0.0
    %399 = vmatprep.subr.mxu0 0.0
    %400 = vmatpush1.xpose.msra.mxu0 0.0
    %401 = vmatprep.subr.mxu0 0.0
    %402 = vmatpush1.xpose.msra.mxu0 0.0
    %403 = vmatprep.subr.mxu0 0.0
    %404 = vmatpush1.xpose.msra.mxu0 0.0
    %405 = vmatprep.subr.mxu0 0.0
    %406 = vmatpush1.xpose.msra.mxu0 0.0
    %407 = vmatprep.subr.mxu0 0.0
    %408 = vmatpush1.xpose.msra.mxu0 0.0
    %409 = vmatprep.subr.mxu0 0.0
    %410 = vmatpush1.xpose.msra.mxu0 0.0
    %411 = vmatprep.subr.mxu0 0.0
    %412 = vmatpush1.xpose.msra.mxu0 0.0
    %413 = vmatprep.subr.mxu0 0.0
    %414 = vmatpush1.xpose.msra.mxu0 0.0
    %415 = vmatprep.subr.mxu0 %v359
    %416 = vmatpush1.xpose.msra.mxu0 %v358
    %417 = vmatprep.subr.mxu0 0.0
    %418 = vmatpush2.xpose.msra.mxu0 0.0
    %419 = vmatprep.subr.mxu0 0.0
    %420 = vmatpush2.xpose.msra.mxu0 0.0
    %421 = vmatprep.subr.mxu0 0.0
    %422 = vmatpush2.xpose.msra.mxu0 0.0
    %423 = vmatprep.subr.mxu0 0.0
    %424 = vmatpush2.xpose.msra.mxu0 0.0
    %425 = vmatprep.subr.mxu0 0.0
    %426 = vmatpush2.xpose.msra.mxu0 0.0
    %427 = vmatprep.subr.mxu0 0.0
    %428 = vmatpush2.xpose.msra.mxu0 0.0
    %429 = vmatprep.subr.mxu0 0.0
    %430 = vmatpush2.xpose.msra.mxu0 0.0
    %431 = vmatprep.subr.mxu0 0.0
    %432 = vmatpush2.xpose.msra.mxu0 0.0
    %433 = vmatprep.subr.mxu0 0.0
    %434 = vmatpush2.xpose.msra.mxu0 0.0
    %435 = vmatprep.subr.mxu0 0.0
    %436 = vmatpush2.xpose.msra.mxu0 0.0
    %437 = vmatprep.subr.mxu0 0.0
    %438 = vmatpush2.xpose.msra.mxu0 0.0
    %439 = vmatprep.subr.mxu0 0.0
    %440 = vmatpush2.xpose.msra.mxu0 0.0
    %441 = vmatprep.subr.mxu0 0.0
    %442 = vmatpush2.xpose.msra.mxu0 0.0
    %443 = vmatprep.subr.mxu0 0.0
    %444 = vmatpush2.xpose.msra.mxu0 0.0
    %445 = vmatprep.subr.mxu0 0.0
    %446 = vmatpush2.xpose.msra.mxu0 0.0
    %447 = vmatprep.subr.mxu0 0.0
    %448 = vmatpush2.xpose.msra.mxu0 0.0
    %449 = vmatprep.mubr.f32.mxu0 %v372
    %450 = vmatmul.mubr.f32.gmra.mxu0 %v368
    %v451 = vpop.f32.mrf.mxu0
    %v452 = vadd.f32 %v363, %v451
    %v453 = vpop.f32.mrf.mxu0
    %454 = vdwg.mxu0
    %455 = vmatprep.subr.mxu0 0.0
    %456 = vmatpush1.xpose.msra.mxu0 0.0
    %457 = vmatprep.subr.mxu0 0.0
    %458 = vmatpush1.xpose.msra.mxu0 0.0
    %459 = vmatprep.subr.mxu0 0.0
    %460 = vmatpush1.xpose.msra.mxu0 0.0
    %461 = vmatprep.subr.mxu0 0.0
    %462 = vmatpush1.xpose.msra.mxu0 0.0
    %463 = vmatprep.subr.mxu0 0.0
    %464 = vmatpush1.xpose.msra.mxu0 0.0
    %465 = vmatprep.subr.mxu0 0.0
    %466 = vmatpush1.xpose.msra.mxu0 0.0
    %467 = vmatprep.subr.mxu0 0.0
    %468 = vmatpush1.xpose.msra.mxu0 0.0
    %469 = vmatprep.subr.mxu0 0.0
    %470 = vmatpush1.xpose.msra.mxu0 0.0
    %471 = vmatprep.subr.mxu0 0.0
    %472 = vmatpush1.xpose.msra.mxu0 0.0
    %473 = vmatprep.subr.mxu0 0.0
    %474 = vmatpush1.xpose.msra.mxu0 0.0
    %475 = vmatprep.subr.mxu0 0.0
    %476 = vmatpush1.xpose.msra.mxu0 0.0
    %477 = vmatprep.subr.mxu0 0.0
    %478 = vmatpush1.xpose.msra.mxu0 0.0
    %479 = vmatprep.subr.mxu0 0.0
    %480 = vmatpush1.xpose.msra.mxu0 0.0
    %481 = vmatprep.subr.mxu0 0.0
    %482 = vmatpush1.xpose.msra.mxu0 0.0
    %483 = vmatprep.subr.mxu0 0.0
    %484 = vmatpush1.xpose.msra.mxu0 0.0
    %485 = vmatprep.subr.mxu0 0.0
    %486 = vmatpush1.xpose.msra.mxu0 %v383
    %487 = vmatprep.subr.mxu0 0.0
    %488 = vmatpush2.xpose.msra.mxu0 0.0
    %489 = vmatprep.subr.mxu0 0.0
    %490 = vmatpush2.xpose.msra.mxu0 0.0
    %491 = vmatprep.subr.mxu0 0.0
    %492 = vmatpush2.xpose.msra.mxu0 0.0
    %493 = vmatprep.subr.mxu0 0.0
    %494 = vmatpush2.xpose.msra.mxu0 0.0
    %495 = vmatprep.subr.mxu0 0.0
    %496 = vmatpush2.xpose.msra.mxu0 0.0
    %497 = vmatprep.subr.mxu0 0.0
    %498 = vmatpush2.xpose.msra.mxu0 0.0
    %499 = vmatprep.subr.mxu0 0.0
    %500 = vmatpush2.xpose.msra.mxu0 0.0
    %501 = vmatprep.subr.mxu0 0.0
    %502 = vmatpush2.xpose.msra.mxu0 0.0
    %503 = vmatprep.subr.mxu0 0.0
    %504 = vmatpush2.xpose.msra.mxu0 0.0
    %505 = vmatprep.subr.mxu0 0.0
    %506 = vmatpush2.xpose.msra.mxu0 0.0
    %507 = vmatprep.subr.mxu0 0.0
    %508 = vmatpush2.xpose.msra.mxu0 0.0
    %509 = vmatprep.subr.mxu0 0.0
    %510 = vmatpush2.xpose.msra.mxu0 0.0
    %511 = vmatprep.subr.mxu0 0.0
    %512 = vmatpush2.xpose.msra.mxu0 0.0
    %513 = vmatprep.subr.mxu0 0.0
    %514 = vmatpush2.xpose.msra.mxu0 0.0
    %515 = vmatprep.subr.mxu0 0.0
    %516 = vmatpush2.xpose.msra.mxu0 0.0
    %517 = vmatprep.subr.mxu0 0.0
    %518 = vmatpush2.xpose.msra.mxu0 0.0
    %519 = vmatprep.mubr.f32.mxu0 0.0
    %520 = vmatmul.mubr.f32.gmra.mxu0 %v380
    %v521 = vpop.f32.mrf.mxu0
    %v522 = vadd.f32 %v452, %v521
    %v523 = vpop.f32.mrf.mxu0
    %524 = vdwg.mxu0
    %v525 = vxor.u32 %v522, 2147483648
    %v526 = vmul.f32 %v525, 1.442695
    %v527 = vpow.pop %v526
    %v528 = vadd.f32 %v527, 1.0
    %v529 = vrcp.pop %v528
    %v530 = vmul.f32 1.0, %v529
    %vm531 = vcmask 57344
    %532 = vst.msk [vmem:[#allocation8] sm:$0x1] %vm531, %v530
    // Predicated region
    $region30: #{tpu_custom_call.1} parent=1 // pred_check
      _
    $region31: #{tpu_custom_call.1} parent=1 // pred_check_branch
      %534 = sbr.rel (0) target = $region33
    $region32: #{tpu_custom_call.1} parent=1 // pred_region
      %s536 = ssub.s32 16, 16
      %537 = vsyncadd [#allocation5], %s536
      %s539 = sshll.u32 [#allocation8], 4
      %s540 = int_to_ptr.vmem [resolvable:$true] %s539
      %542 = dma.vmem_to_hbm [thread:$0]  %s540, 16, %s5, [#allocation5]
    $region33: #{tpu_custom_call.1} parent=1 // pred_fallthru
      _
    // Predicated region
    $region34: #{tpu_custom_call.1} parent=1 // pred_check
      _
    $region35: #{tpu_custom_call.1} parent=1 // pred_check_branch
      %544 = sbr.rel (0) target = $region37
    $region36: #{tpu_custom_call.1} parent=1 // pred_region
      %545 = dma.done [#allocation5], 16
    $region37: #{tpu_custom_call.1} parent=1 // pred_fallthru
      _
    %546 = vsyncpa [#allocation4], 1
    %547 = vsyncpa [#allocation7], 1
    %548 = vsyncpa [#allocation5], 1

</llo_original>
